<compile_context>
chip_gen: v6e
topology: v6e:2x2x1
jax: 0.10.0
libtpu: 0.0.40
codegen_flags: <defaults>
</compile_context>

<pallas_src>
import jax
import jax.numpy as jnp
import numpy as np
from jax.experimental import pallas as pl
from jax.experimental.pallas import tpu as pltpu


def _bahdanau_kernel(q_ref, wq_ref, we_ref, pk_ref, v_ref, mask_ref,
                     ctx_ref, alpha_ref):
    # q_ref   : (Q, Bb)      wq_ref : (H, Q)      we_ref   : (H, 1)
    # pk_ref  : (M, H, Bb)   v_ref  : (M, V, Bb)  mask_ref : (M, Bb) int32
    # ctx_ref : (V, Bb)      alpha_ref : (M, Bb)
    f32 = jnp.float32
    M = pk_ref.shape[0]

    # --- query projection: one wide-N MXU matmul for the whole lane block -----
    qh = jnp.dot(wq_ref[...].astype(f32), q_ref[...].astype(f32),
                 preferred_element_type=f32)                          # (H, Bb)
    we = we_ref[...].astype(f32)                                      # (H, 1)

    # --- energy scores, one encoder position at a time -------------------------
    # Keeps live state at (H,Bb)/(1,Bb) instead of a (M,H,Bb) tanh temporary.
    # (For large production M (>=128) an MXU contraction would be preferred.)
    rows = []
    for m in range(M):                       # M is small & static -> unrolled
        t_m = jnp.tanh(qh + pk_ref[m].astype(f32))                    # (H, Bb)
        rows.append(jnp.sum(we * t_m, axis=0, keepdims=True))         # (1, Bb)
    scores = jnp.concatenate(rows, axis=0)                            # (M, Bb)

    # --- masked softmax over M (sublane axis) ----------------------------------
    # NOTE: a fully-masked column yields NaN, same as the PyTorch reference.
    scores = jnp.where(mask_ref[...] == 0, -jnp.inf, scores)
    smax = jnp.max(scores, axis=0, keepdims=True)                     # (1, Bb)
    e = jnp.exp(scores - smax)
    alphas = e / jnp.sum(e, axis=0, keepdims=True)                    # exact div

    # --- context: sum_m alphas[m] * value[m]; pure VPU accumulation over M -----
    ctx = jnp.zeros(ctx_ref.shape, f32)
    for m in range(M):
        ctx = ctx + alphas[m:m + 1, :] * v_ref[m].astype(f32)         # (V, Bb)

    alpha_ref[...] = alphas.astype(alpha_ref.dtype)
    ctx_ref[...] = ctx.astype(ctx_ref.dtype)


def bahdanau_attention(query, proj_key, value, mask, wq, we, *, b_blk=512):
    """query:[B,1,Q], proj_key:[B,M,H], value:[B,M,V], mask:[B,1,M],
    wq:[H,Q] (query_layer weight), we:[1,H] (energy_layer weight).
    Returns (context:[B,1,V], alphas:[B,1,M])."""
    B, _, Q = query.shape
    _, M, H = proj_key.shape
    V = value.shape[-1]
    out_dtype = query.dtype

    # ---- layout plumbing: batch on the lane (last) axis -----------------------
    q_t = query.reshape(B, Q).T                                  # (Q, B)
    pk_t = jnp.transpose(proj_key, (1, 2, 0))                    # (M, H, B)
    v_t = jnp.transpose(value, (1, 2, 0))                        # (M, V, B)
    mask_t = mask.reshape(B, M).T.astype(jnp.int32)              # (M, B)
    we_col = we.reshape(H, 1)                                    # (H, 1)

    # ---- choose the lane block ------------------------------------------------
    if B < 128:
        # tiny batch: one full-array block (lane dim == full dim is allowed).
        blk, Bp = B, B
    else:
        n128 = -(-B // 128)                       # 128-lane chunks needed
        # keep >=2 grid steps when possible (v7x megacore), block <= b_blk
        blk = 128 * max(1, min(b_blk // 128, n128 // 2))
        Bp = -(-B // blk) * blk
    grid = (Bp // blk,)

    if Bp != B:
        pad = Bp - B
        q_t = jnp.pad(q_t, ((0, 0), (0, pad)))
        pk_t = jnp.pad(pk_t, ((0, 0), (0, 0), (0, pad)))
        v_t = jnp.pad(v_t, ((0, 0), (0, 0), (0, pad)))
        # padded columns stay unmasked so they remain finite (sliced off below)
        mask_t = jnp.pad(mask_t, ((0, 0), (0, pad)), constant_values=1)

    # ---- explicit VMEM budget (blocks are double-buffered) --------------------
    nbytes = lambda shape, dt: int(np.prod(shape)) * jnp.dtype(dt).itemsize
    block_bytes = (nbytes((Q, blk), q_t.dtype) + nbytes((H, Q), wq.dtype)
                   + nbytes((H, 1), we.dtype)
                   + nbytes((M, H, blk), pk_t.dtype)
                   + nbytes((M, V, blk), v_t.dtype)
                   + nbytes((M, blk), jnp.int32)
                   + nbytes((V, blk), out_dtype) + nbytes((M, blk), out_dtype))
    vmem_limit = int(min(48 * 2**20, max(32 * 2**20, 4 * block_bytes)))

    ctx_t, alphas_t = pl.pallas_call(
        _bahdanau_kernel,
        out_shape=(jax.ShapeDtypeStruct((V, Bp), out_dtype),
                   jax.ShapeDtypeStruct((M, Bp), out_dtype)),
        grid_spec=pltpu.PrefetchScalarGridSpec(
            num_scalar_prefetch=0,
            grid=grid,
            in_specs=[
                pl.BlockSpec((Q, blk), lambda b: (0, b)),        # query (Q,B)
                pl.BlockSpec((H, Q), lambda b: (0, 0)),          # Wq (shared)
                pl.BlockSpec((H, 1), lambda b: (0, 0)),          # We (shared)
                pl.BlockSpec((M, H, blk), lambda b: (0, 0, b)),  # proj_key
                pl.BlockSpec((M, V, blk), lambda b: (0, 0, b)),  # value
                pl.BlockSpec((M, blk), lambda b: (0, b)),        # mask
            ],
            out_specs=[
                pl.BlockSpec((V, blk), lambda b: (0, b)),        # context
                pl.BlockSpec((M, blk), lambda b: (0, b)),        # alphas
            ],
        ),
        compiler_params=pltpu.CompilerParams(
            dimension_semantics=("parallel",),
            vmem_limit_bytes=vmem_limit),
    )(q_t, wq, we_col, pk_t, v_t, mask_t)

    ctx = ctx_t[:, :B].T.reshape(B, 1, V)
    alphas = alphas_t[:, :B].T.reshape(B, 1, M)
    return ctx, alphas


def _reference(query, proj_key, value, mask, wq, we):
    q = query @ wq.T                                   # [B,1,H]
    t = jnp.tanh(q + proj_key)                         # [B,M,H]
    scores = t @ we.T                                  # [B,M,1]
    scores = jnp.swapaxes(scores, 1, 2)                # [B,1,M]
    scores = jnp.where(mask == 0, -jnp.inf, scores)
    alphas = jax.nn.softmax(scores, axis=-1)
    context = alphas @ value
    return context, alphas


def _run_case(key, B, M, hidden_size):
    query_size = hidden_size
    key_size = 2 * hidden_size
    V = 2 * hidden_size

    k_q, k_pk, k_v, k_wq, k_we, k_wk, k_len = jax.random.split(key, 7)

    # nn.Linear(out, in), bias=False weights (deterministic uniform init)
    wq = jax.random.uniform(k_wq, (hidden_size, query_size), jnp.float32,
                            -1.0 / np.sqrt(query_size), 1.0 / np.sqrt(query_size))
    we = jax.random.uniform(k_we, (1, hidden_size), jnp.float32,
                            -1.0 / np.sqrt(hidden_size), 1.0 / np.sqrt(hidden_size))
    # key_layer weight exists in __init__ but is unused in forward (proj_key is
    # precomputed by the caller) — created only for parameter fidelity.
    wk = jax.random.uniform(k_wk, (hidden_size, key_size), jnp.float32,
                            -1.0 / np.sqrt(key_size), 1.0 / np.sqrt(key_size))
    del wk

    query = jax.random.normal(k_q, (B, 1, query_size), jnp.float32)
    proj_key = jax.random.normal(k_pk, (B, M, hidden_size), jnp.float32)
    value = jax.random.normal(k_v, (B, M, V), jnp.float32)

    # varying valid lengths, >=1 everywhere (reference has the same NaN mode at 0)
    lengths = jax.random.randint(k_len, (B,), 1, M + 1)
    mask = (jnp.arange(M)[None, None, :] < lengths[:, None, None]).astype(jnp.int32)

    ctx, alphas = bahdanau_attention(query, proj_key, value, mask, wq, we)
    jax.block_until_ready((ctx, alphas))

    ctx_ref, alphas_ref = _reference(query, proj_key, value, mask, wq, we)
    np.testing.assert_allclose(np.asarray(ctx), np.asarray(ctx_ref),
                               rtol=1e-4, atol=1e-4)
    np.testing.assert_allclose(np.asarray(alphas), np.asarray(alphas_ref),
                               rtol=1e-4, atol=1e-4)


if __name__ == "__main__":
    hidden_size = 32
    M = 8
    root = jax.random.PRNGKey(0)
    k1, k2 = jax.random.split(root)

    # Blocked path: B=256 -> two 128-lane grid steps (megacore-friendly).
    _run_case(k1, B=256, M=M, hidden_size=hidden_size)
    # Small-batch fallback path: single full-array block.
    _run_case(k2, B=16, M=M, hidden_size=hidden_size)

    print("KERNEL_OK")
</pallas_src>

<mosaic_0001>
module attributes {stable_mosaic.version = 11 : i64} {
  func.func @_bahdanau_kernel(%arg0: i32, %arg1: memref<32x128xf32, #tpu.memory_space<vmem>>, %arg2: memref<32x32xf32, #tpu.memory_space<vmem>>, %arg3: memref<32x1xf32, #tpu.memory_space<vmem>>, %arg4: memref<8x32x128xf32, #tpu.memory_space<vmem>>, %arg5: memref<8x64x128xf32, #tpu.memory_space<vmem>>, %arg6: memref<8x128xi32, #tpu.memory_space<vmem>>, %arg7: memref<64x128xf32, #tpu.memory_space<vmem>>, %arg8: memref<8x128xf32, #tpu.memory_space<vmem>>) attributes {dimension_semantics = [#tpu.dimension_semantics<parallel>], iteration_bounds = array<i64: 2>, scalar_prefetch = 0 : i64, scratch_operands = 0 : i64, tpu.core_type = #tpu.core_type<tc>, window_params = [{transform_indices = @transform_0, window_bounds = array<i64: 32, 128>}, {pipeline_mode = #tpu.pipeline_mode<synchronous>, transform_indices = @transform_1, window_bounds = array<i64: 32, 32>}, {pipeline_mode = #tpu.pipeline_mode<synchronous>, transform_indices = @transform_2, window_bounds = array<i64: 32, 1>}, {transform_indices = @transform_3, window_bounds = array<i64: 8, 32, 128>}, {transform_indices = @transform_4, window_bounds = array<i64: 8, 64, 128>}, {transform_indices = @transform_5, window_bounds = array<i64: 8, 128>}, {transform_indices = @transform_6, window_bounds = array<i64: 64, 128>}, {transform_indices = @transform_7, window_bounds = array<i64: 8, 128>}]} {
    %c0 = arith.constant 0 : index
    %c0_0 = arith.constant 0 : index
    %0 = vector.load %arg2[%c0, %c0_0] : memref<32x32xf32, #tpu.memory_space<vmem>>, vector<32x32xf32>
    %c0_1 = arith.constant 0 : index
    %c0_2 = arith.constant 0 : index
    %1 = vector.load %arg1[%c0_1, %c0_2] : memref<32x128xf32, #tpu.memory_space<vmem>>, vector<32x128xf32>
    %cst = arith.constant dense<0.000000e+00> : vector<32x128xf32>
    %2 = tpu.matmul %0, %1, %cst {dimension_numbers = #tpu.dot_dimension_numbers<[1], [0], [0], [1], [0, 0, 1, 1], [], []>} : vector<32x32xf32>, vector<32x128xf32>, vector<32x128xf32> -> vector<32x128xf32>
    %c0_3 = arith.constant 0 : index
    %c0_4 = arith.constant 0 : index
    %3 = vector.load %arg3[%c0_3, %c0_4] : memref<32x1xf32, #tpu.memory_space<vmem>>, vector<32x1xf32>
    %c0_5 = arith.constant 0 : index
    %c0_6 = arith.constant 0 : index
    %c0_7 = arith.constant 0 : index
    %4 = vector.load %arg4[%c0_5, %c0_6, %c0_7] : memref<8x32x128xf32, #tpu.memory_space<vmem>>, vector<1x32x128xf32>
    %5 = vector.shape_cast %4 : vector<1x32x128xf32> to vector<32x128xf32>
    %6 = arith.addf %2, %5 : vector<32x128xf32>
    %7 = math.tanh %6 : vector<32x128xf32>
    %8 = vector.broadcast %3 : vector<32x1xf32> to vector<32x128xf32>
    %9 = arith.mulf %8, %7 : vector<32x128xf32>
    %cst_8 = arith.constant dense<0.000000e+00> : vector<128xf32>
    %10 = vector.multi_reduction <add>, %9, %cst_8 [0] : vector<32x128xf32> to vector<128xf32>
    %11 = vector.shape_cast %10 : vector<128xf32> to vector<1x128xf32>
    %c1 = arith.constant 1 : index
    %c0_9 = arith.constant 0 : index
    %c0_10 = arith.constant 0 : index
    %12 = vector.load %arg4[%c1, %c0_9, %c0_10] : memref<8x32x128xf32, #tpu.memory_space<vmem>>, vector<1x32x128xf32>
    %13 = vector.shape_cast %12 : vector<1x32x128xf32> to vector<32x128xf32>
    %14 = arith.addf %2, %13 : vector<32x128xf32>
    %15 = math.tanh %14 : vector<32x128xf32>
    %16 = vector.broadcast %3 : vector<32x1xf32> to vector<32x128xf32>
    %17 = arith.mulf %16, %15 : vector<32x128xf32>
    %cst_11 = arith.constant dense<0.000000e+00> : vector<128xf32>
    %18 = vector.multi_reduction <add>, %17, %cst_11 [0] : vector<32x128xf32> to vector<128xf32>
    %19 = vector.shape_cast %18 : vector<128xf32> to vector<1x128xf32>
    %c2 = arith.constant 2 : index
    %c0_12 = arith.constant 0 : index
    %c0_13 = arith.constant 0 : index
    %20 = vector.load %arg4[%c2, %c0_12, %c0_13] : memref<8x32x128xf32, #tpu.memory_space<vmem>>, vector<1x32x128xf32>
    %21 = vector.shape_cast %20 : vector<1x32x128xf32> to vector<32x128xf32>
    %22 = arith.addf %2, %21 : vector<32x128xf32>
    %23 = math.tanh %22 : vector<32x128xf32>
    %24 = vector.broadcast %3 : vector<32x1xf32> to vector<32x128xf32>
    %25 = arith.mulf %24, %23 : vector<32x128xf32>
    %cst_14 = arith.constant dense<0.000000e+00> : vector<128xf32>
    %26 = vector.multi_reduction <add>, %25, %cst_14 [0] : vector<32x128xf32> to vector<128xf32>
    %27 = vector.shape_cast %26 : vector<128xf32> to vector<1x128xf32>
    %c3 = arith.constant 3 : index
    %c0_15 = arith.constant 0 : index
    %c0_16 = arith.constant 0 : index
    %28 = vector.load %arg4[%c3, %c0_15, %c0_16] : memref<8x32x128xf32, #tpu.memory_space<vmem>>, vector<1x32x128xf32>
    %29 = vector.shape_cast %28 : vector<1x32x128xf32> to vector<32x128xf32>
    %30 = arith.addf %2, %29 : vector<32x128xf32>
    %31 = math.tanh %30 : vector<32x128xf32>
    %32 = vector.broadcast %3 : vector<32x1xf32> to vector<32x128xf32>
    %33 = arith.mulf %32, %31 : vector<32x128xf32>
    %cst_17 = arith.constant dense<0.000000e+00> : vector<128xf32>
    %34 = vector.multi_reduction <add>, %33, %cst_17 [0] : vector<32x128xf32> to vector<128xf32>
    %35 = vector.shape_cast %34 : vector<128xf32> to vector<1x128xf32>
    %c4 = arith.constant 4 : index
    %c0_18 = arith.constant 0 : index
    %c0_19 = arith.constant 0 : index
    %36 = vector.load %arg4[%c4, %c0_18, %c0_19] : memref<8x32x128xf32, #tpu.memory_space<vmem>>, vector<1x32x128xf32>
    %37 = vector.shape_cast %36 : vector<1x32x128xf32> to vector<32x128xf32>
    %38 = arith.addf %2, %37 : vector<32x128xf32>
    %39 = math.tanh %38 : vector<32x128xf32>
    %40 = vector.broadcast %3 : vector<32x1xf32> to vector<32x128xf32>
    %41 = arith.mulf %40, %39 : vector<32x128xf32>
    %cst_20 = arith.constant dense<0.000000e+00> : vector<128xf32>
    %42 = vector.multi_reduction <add>, %41, %cst_20 [0] : vector<32x128xf32> to vector<128xf32>
    %43 = vector.shape_cast %42 : vector<128xf32> to vector<1x128xf32>
    %c5 = arith.constant 5 : index
    %c0_21 = arith.constant 0 : index
    %c0_22 = arith.constant 0 : index
    %44 = vector.load %arg4[%c5, %c0_21, %c0_22] : memref<8x32x128xf32, #tpu.memory_space<vmem>>, vector<1x32x128xf32>
    %45 = vector.shape_cast %44 : vector<1x32x128xf32> to vector<32x128xf32>
    %46 = arith.addf %2, %45 : vector<32x128xf32>
    %47 = math.tanh %46 : vector<32x128xf32>
    %48 = vector.broadcast %3 : vector<32x1xf32> to vector<32x128xf32>
    %49 = arith.mulf %48, %47 : vector<32x128xf32>
    %cst_23 = arith.constant dense<0.000000e+00> : vector<128xf32>
    %50 = vector.multi_reduction <add>, %49, %cst_23 [0] : vector<32x128xf32> to vector<128xf32>
    %51 = vector.shape_cast %50 : vector<128xf32> to vector<1x128xf32>
    %c6 = arith.constant 6 : index
    %c0_24 = arith.constant 0 : index
    %c0_25 = arith.constant 0 : index
    %52 = vector.load %arg4[%c6, %c0_24, %c0_25] : memref<8x32x128xf32, #tpu.memory_space<vmem>>, vector<1x32x128xf32>
    %53 = vector.shape_cast %52 : vector<1x32x128xf32> to vector<32x128xf32>
    %54 = arith.addf %2, %53 : vector<32x128xf32>
    %55 = math.tanh %54 : vector<32x128xf32>
    %56 = vector.broadcast %3 : vector<32x1xf32> to vector<32x128xf32>
    %57 = arith.mulf %56, %55 : vector<32x128xf32>
    %cst_26 = arith.constant dense<0.000000e+00> : vector<128xf32>
    %58 = vector.multi_reduction <add>, %57, %cst_26 [0] : vector<32x128xf32> to vector<128xf32>
    %59 = vector.shape_cast %58 : vector<128xf32> to vector<1x128xf32>
    %c7 = arith.constant 7 : index
    %c0_27 = arith.constant 0 : index
    %c0_28 = arith.constant 0 : index
    %60 = vector.load %arg4[%c7, %c0_27, %c0_28] : memref<8x32x128xf32, #tpu.memory_space<vmem>>, vector<1x32x128xf32>
    %61 = vector.shape_cast %60 : vector<1x32x128xf32> to vector<32x128xf32>
    %62 = arith.addf %2, %61 : vector<32x128xf32>
    %63 = math.tanh %62 : vector<32x128xf32>
    %64 = vector.broadcast %3 : vector<32x1xf32> to vector<32x128xf32>
    %65 = arith.mulf %64, %63 : vector<32x128xf32>
    %cst_29 = arith.constant dense<0.000000e+00> : vector<128xf32>
    %66 = vector.multi_reduction <add>, %65, %cst_29 [0] : vector<32x128xf32> to vector<128xf32>
    %67 = vector.shape_cast %66 : vector<128xf32> to vector<1x128xf32>
    %68 = tpu.concatenate %11, %19, %27, %35, %43, %51, %59, %67 in 0 : vector<1x128xf32>, vector<1x128xf32>, vector<1x128xf32>, vector<1x128xf32>, vector<1x128xf32>, vector<1x128xf32>, vector<1x128xf32>, vector<1x128xf32> -> vector<8x128xf32>
    %c0_30 = arith.constant 0 : index
    %c0_31 = arith.constant 0 : index
    %69 = vector.load %arg6[%c0_30, %c0_31] : memref<8x128xi32, #tpu.memory_space<vmem>>, vector<8x128xi32>
    %c0_i32 = arith.constant 0 : i32
    %70 = vector.broadcast %c0_i32 : i32 to vector<8x128xi32>
    %71 = arith.cmpi eq, %69, %70 : vector<8x128xi32>
    %cst_32 = arith.constant 0xFF800000 : f32
    %72 = vector.broadcast %cst_32 : f32 to vector<8x128xf32>
    %73 = arith.select %71, %72, %68 : vector<8x128xi1>, vector<8x128xf32>
    %cst_33 = arith.constant dense<0xFF800000> : vector<128xf32>
    %74 = vector.multi_reduction <maximumf>, %73, %cst_33 [0] : vector<8x128xf32> to vector<128xf32>
    %75 = vector.shape_cast %74 : vector<128xf32> to vector<1x128xf32>
    %76 = vector.broadcast %75 : vector<1x128xf32> to vector<8x128xf32>
    %77 = arith.subf %73, %76 : vector<8x128xf32>
    %78 = math.exp %77 : vector<8x128xf32>
    %cst_34 = arith.constant dense<0.000000e+00> : vector<128xf32>
    %79 = vector.multi_reduction <add>, %78, %cst_34 [0] : vector<8x128xf32> to vector<128xf32>
    %80 = vector.shape_cast %79 : vector<128xf32> to vector<1x128xf32>
    %81 = vector.broadcast %80 : vector<1x128xf32> to vector<8x128xf32>
    %82 = arith.divf %78, %81 : vector<8x128xf32>
    %cst_35 = arith.constant 0.000000e+00 : f32
    %83 = vector.broadcast %cst_35 : f32 to vector<64x128xf32>
    %84 = vector.extract_strided_slice %82 {offsets = [0, 0], sizes = [1, 128], strides = [1, 1]} : vector<8x128xf32> to vector<1x128xf32>
    %c0_36 = arith.constant 0 : index
    %c0_37 = arith.constant 0 : index
    %c0_38 = arith.constant 0 : index
    %85 = vector.load %arg5[%c0_36, %c0_37, %c0_38] : memref<8x64x128xf32, #tpu.memory_space<vmem>>, vector<1x64x128xf32>
    %86 = vector.shape_cast %85 : vector<1x64x128xf32> to vector<64x128xf32>
    %87 = vector.broadcast %84 : vector<1x128xf32> to vector<64x128xf32>
    %88 = arith.mulf %87, %86 : vector<64x128xf32>
    %89 = arith.addf %83, %88 : vector<64x128xf32>
    %90 = vector.extract_strided_slice %82 {offsets = [1, 0], sizes = [1, 128], strides = [1, 1]} : vector<8x128xf32> to vector<1x128xf32>
    %c1_39 = arith.constant 1 : index
    %c0_40 = arith.constant 0 : index
    %c0_41 = arith.constant 0 : index
    %91 = vector.load %arg5[%c1_39, %c0_40, %c0_41] : memref<8x64x128xf32, #tpu.memory_space<vmem>>, vector<1x64x128xf32>
    %92 = vector.shape_cast %91 : vector<1x64x128xf32> to vector<64x128xf32>
    %93 = vector.broadcast %90 : vector<1x128xf32> to vector<64x128xf32>
    %94 = arith.mulf %93, %92 : vector<64x128xf32>
    %95 = arith.addf %89, %94 : vector<64x128xf32>
    %96 = vector.extract_strided_slice %82 {offsets = [2, 0], sizes = [1, 128], strides = [1, 1]} : vector<8x128xf32> to vector<1x128xf32>
    %c2_42 = arith.constant 2 : index
    %c0_43 = arith.constant 0 : index
    %c0_44 = arith.constant 0 : index
    %97 = vector.load %arg5[%c2_42, %c0_43, %c0_44] : memref<8x64x128xf32, #tpu.memory_space<vmem>>, vector<1x64x128xf32>
    %98 = vector.shape_cast %97 : vector<1x64x128xf32> to vector<64x128xf32>
    %99 = vector.broadcast %96 : vector<1x128xf32> to vector<64x128xf32>
    %100 = arith.mulf %99, %98 : vector<64x128xf32>
    %101 = arith.addf %95, %100 : vector<64x128xf32>
    %102 = vector.extract_strided_slice %82 {offsets = [3, 0], sizes = [1, 128], strides = [1, 1]} : vector<8x128xf32> to vector<1x128xf32>
    %c3_45 = arith.constant 3 : index
    %c0_46 = arith.constant 0 : index
    %c0_47 = arith.constant 0 : index
    %103 = vector.load %arg5[%c3_45, %c0_46, %c0_47] : memref<8x64x128xf32, #tpu.memory_space<vmem>>, vector<1x64x128xf32>
    %104 = vector.shape_cast %103 : vector<1x64x128xf32> to vector<64x128xf32>
    %105 = vector.broadcast %102 : vector<1x128xf32> to vector<64x128xf32>
    %106 = arith.mulf %105, %104 : vector<64x128xf32>
    %107 = arith.addf %101, %106 : vector<64x128xf32>
    %108 = vector.extract_strided_slice %82 {offsets = [4, 0], sizes = [1, 128], strides = [1, 1]} : vector<8x128xf32> to vector<1x128xf32>
    %c4_48 = arith.constant 4 : index
    %c0_49 = arith.constant 0 : index
    %c0_50 = arith.constant 0 : index
    %109 = vector.load %arg5[%c4_48, %c0_49, %c0_50] : memref<8x64x128xf32, #tpu.memory_space<vmem>>, vector<1x64x128xf32>
    %110 = vector.shape_cast %109 : vector<1x64x128xf32> to vector<64x128xf32>
    %111 = vector.broadcast %108 : vector<1x128xf32> to vector<64x128xf32>
    %112 = arith.mulf %111, %110 : vector<64x128xf32>
    %113 = arith.addf %107, %112 : vector<64x128xf32>
    %114 = vector.extract_strided_slice %82 {offsets = [5, 0], sizes = [1, 128], strides = [1, 1]} : vector<8x128xf32> to vector<1x128xf32>
    %c5_51 = arith.constant 5 : index
    %c0_52 = arith.constant 0 : index
    %c0_53 = arith.constant 0 : index
    %115 = vector.load %arg5[%c5_51, %c0_52, %c0_53] : memref<8x64x128xf32, #tpu.memory_space<vmem>>, vector<1x64x128xf32>
    %116 = vector.shape_cast %115 : vector<1x64x128xf32> to vector<64x128xf32>
    %117 = vector.broadcast %114 : vector<1x128xf32> to vector<64x128xf32>
    %118 = arith.mulf %117, %116 : vector<64x128xf32>
    %119 = arith.addf %113, %118 : vector<64x128xf32>
    %120 = vector.extract_strided_slice %82 {offsets = [6, 0], sizes = [1, 128], strides = [1, 1]} : vector<8x128xf32> to vector<1x128xf32>
    %c6_54 = arith.constant 6 : index
    %c0_55 = arith.constant 0 : index
    %c0_56 = arith.constant 0 : index
    %121 = vector.load %arg5[%c6_54, %c0_55, %c0_56] : memref<8x64x128xf32, #tpu.memory_space<vmem>>, vector<1x64x128xf32>
    %122 = vector.shape_cast %121 : vector<1x64x128xf32> to vector<64x128xf32>
    %123 = vector.broadcast %120 : vector<1x128xf32> to vector<64x128xf32>
    %124 = arith.mulf %123, %122 : vector<64x128xf32>
    %125 = arith.addf %119, %124 : vector<64x128xf32>
    %126 = vector.extract_strided_slice %82 {offsets = [7, 0], sizes = [1, 128], strides = [1, 1]} : vector<8x128xf32> to vector<1x128xf32>
    %c7_57 = arith.constant 7 : index
    %c0_58 = arith.constant 0 : index
    %c0_59 = arith.constant 0 : index
    %127 = vector.load %arg5[%c7_57, %c0_58, %c0_59] : memref<8x64x128xf32, #tpu.memory_space<vmem>>, vector<1x64x128xf32>
    %128 = vector.shape_cast %127 : vector<1x64x128xf32> to vector<64x128xf32>
    %129 = vector.broadcast %126 : vector<1x128xf32> to vector<64x128xf32>
    %130 = arith.mulf %129, %128 : vector<64x128xf32>
    %131 = arith.addf %125, %130 : vector<64x128xf32>
    %c0_60 = arith.constant 0 : index
    %c0_61 = arith.constant 0 : index
    %132 = vector.load %arg8[%c0_60, %c0_61] : memref<8x128xf32, #tpu.memory_space<vmem>>, vector<8x128xf32>
    tpu.vector_store %arg8[%c0_60, %c0_61], %82 {strides = array<i32>} : memref<8x128xf32, #tpu.memory_space<vmem>>, vector<8x128xf32>,
    %c0_62 = arith.constant 0 : index
    %c0_63 = arith.constant 0 : index
    %133 = vector.load %arg7[%c0_62, %c0_63] : memref<64x128xf32, #tpu.memory_space<vmem>>, vector<64x128xf32>
    tpu.vector_store %arg7[%c0_62, %c0_63], %131 {strides = array<i32>} : memref<64x128xf32, #tpu.memory_space<vmem>>, vector<64x128xf32>,
    return
  }
  func.func @transform_0(%arg0: i32) -> (i32, i32) {
    %c0_i32 = arith.constant 0 : i32
    %c0_i32_0 = arith.constant 0 : i32
    return %c0_i32, %arg0 : i32, i32
  }
  func.func @transform_1(%arg0: i32) -> (i32, i32) {
    %c0_i32 = arith.constant 0 : i32
    %c0_i32_0 = arith.constant 0 : i32
    %c0_i32_1 = arith.constant 0 : i32
    return %c0_i32, %c0_i32_0 : i32, i32
  }
  func.func @transform_2(%arg0: i32) -> (i32, i32) {
    %c0_i32 = arith.constant 0 : i32
    %c0_i32_0 = arith.constant 0 : i32
    %c0_i32_1 = arith.constant 0 : i32
    return %c0_i32, %c0_i32_0 : i32, i32
  }
  func.func @transform_3(%arg0: i32) -> (i32, i32, i32) {
    %c0_i32 = arith.constant 0 : i32
    %c0_i32_0 = arith.constant 0 : i32
    %c0_i32_1 = arith.constant 0 : i32
    return %c0_i32, %c0_i32_0, %arg0 : i32, i32, i32
  }
  func.func @transform_4(%arg0: i32) -> (i32, i32, i32) {
    %c0_i32 = arith.constant 0 : i32
    %c0_i32_0 = arith.constant 0 : i32
    %c0_i32_1 = arith.constant 0 : i32
    return %c0_i32, %c0_i32_0, %arg0 : i32, i32, i32
  }
  func.func @transform_5(%arg0: i32) -> (i32, i32) {
    %c0_i32 = arith.constant 0 : i32
    %c0_i32_0 = arith.constant 0 : i32
    return %c0_i32, %arg0 : i32, i32
  }
  func.func @transform_6(%arg0: i32) -> (i32, i32) {
    %c0_i32 = arith.constant 0 : i32
    %c0_i32_0 = arith.constant 0 : i32
    return %c0_i32, %arg0 : i32, i32
  }
  func.func @transform_7(%arg0: i32) -> (i32, i32) {
    %c0_i32 = arith.constant 0 : i32
    %c0_i32_0 = arith.constant 0 : i32
    return %c0_i32, %arg0 : i32, i32
  }
}

</mosaic_0001>

<llo_original>
// kernel: tpu_custom_call.1
$region0: #{tpu_custom_call.1}
  #allocation0 [shape = 'u32[]', space=smem, size = 0x4, offset = 0x4, fixed_abs, tag = 'smem constant byte address 0x4 - core index']
  #allocation1 [shape = 'u32[144,128]{1,0:T(1,128)}', space=vmem, size = 0x12000, scoped, tag = 'internal scratch']
  %s0 = inlined_call_operand.hbm [shape: f32[32,256], index: 0, kind: input, shape index: {}]
  %s1 = inlined_call_operand.vmem [shape: f32[32,32], index: 1, kind: input, shape index: {}]
  %s2 = inlined_call_operand.vmem [shape: f32[32,1], index: 2, kind: input, shape index: {}]
  %s3 = inlined_call_operand.hbm [shape: f32[8,32,256], index: 3, kind: input, shape index: {}]
  %s4 = inlined_call_operand.hbm [shape: f32[8,64,256], index: 4, kind: input, shape index: {}]
  %s5 = inlined_call_operand.hbm [shape: s32[8,256], index: 5, kind: input, shape index: {}]
  %s6 = inlined_call_operand.hbm [shape: f32[64,256], index: 6, kind: output, shape index: {0}]
  %s7 = inlined_call_operand.hbm [shape: f32[8,256], index: 7, kind: output, shape index: {1}]
  %8 = xla_tuple %s6, %s7
  %s9 = sld [smem:[#allocation0]]
  $region81: #{tpu_custom_call.1} parent=0
    _
  %s11 = ssub.s32 1, %s9
  %s12 = scalar_select 0, %s11, %s9
  $region1: #{tpu_custom_call.1} parent=0
    #allocation2 [shape = 'u8[32768]{0}', space=vmem, size = 0x8000, scoped, tag = 'input window, operand 0']
    #allocation3 [shape = 's32[2]{0}', space=sflag, size = 0x8, scoped, tag = 'scoped memory for tpu_custom_call.1']
    #allocation4 [shape = 's32[2]{0}', space=sflag, size = 0x8, scoped, tag = 'scoped memory for tpu_custom_call.1']
    #allocation5 [shape = 'u8[262144]{0}', space=vmem, size = 0x40000, scoped, tag = 'input window, operand 3']
    #allocation6 [shape = 's32[2]{0}', space=sflag, size = 0x8, scoped, tag = 'scoped memory for tpu_custom_call.1']
    #allocation7 [shape = 'u8[524288]{0}', space=vmem, size = 0x80000, scoped, tag = 'input window, operand 4']
    #allocation8 [shape = 'u8[8192]{0}', space=vmem, size = 0x2000, scoped, tag = 'input window, operand 5']
    #allocation9 [shape = 's32[2]{0}', space=sflag, size = 0x8, scoped, tag = 'scoped memory for tpu_custom_call.1']
    #allocation10 [shape = 'u8[65536]{0}', space=vmem, size = 0x10000, scoped, tag = 'output window, operand 0']
    #allocation11 [shape = 'u8[8192]{0}', space=vmem, size = 0x2000, scoped, tag = 'output window, operand 1']
    #allocation12 [shape = 's32[2]{0}', space=sflag, size = 0x8, scoped, tag = 'scoped memory for tpu_custom_call.1']
    %13 = vsyncpa [#allocation3], 0
    %s14 = scalar_lea.sflag [#allocation3], 1
    %15 = vsyncpa %s14, 0
    %16 = vsyncpa [#allocation6], 0
    %s17 = scalar_lea.sflag [#allocation6], 1
    %18 = vsyncpa %s17, 0
    %19 = vsyncpa [#allocation9], 0
    %s20 = scalar_lea.sflag [#allocation9], 1
    %21 = vsyncpa %s20, 0
    %22 = vsyncpa [#allocation4], 0
    %s23 = scalar_lea.sflag [#allocation4], 1
    %24 = vsyncpa %s23, 0
    %25 = vsyncpa [#allocation12], 0
    %s26 = scalar_lea.sflag [#allocation12], 1
    %27 = vsyncpa %s26, 0
    loop: start=0, step=1, limit=4
    $region2: #{tpu_custom_call.1} parent=1 // loop_pre_header
      _
    $region3: #{tpu_custom_call.1} parent=1 // loop_header
      %s29 = sphi 0, %s33
      %p30 = scmp.ge.s32.totalorder %s29, 4
      %s39 = sphi 0, %s41
      %s42 = sphi 0, %s39
      %s43 = sphi 0, %s42
      %s59 = sphi 0, %s43
      %s63 = sphi 0, %s63
      %s65 = sphi 0, %s63
      %s66 = sphi 0, %s65
      %s80 = sphi 0, %s66
      %s84 = sphi 0, %s84
      %s86 = sphi 0, %s84
      %s87 = sphi 0, %s86
      %s101 = sphi 0, %s87
      %s107 = sphi 0, %s109
      %s110 = sphi 0, %s107
      %s111 = sphi 0, %s110
      %s127 = sphi 0, %s111
      %s133 = sphi 0, %s135
      %s136 = sphi 0, %s133
      %s137 = sphi 0, %s136
      %s153 = sphi 0, %s137
      %s159 = sphi 0, %s161
      %s162 = sphi 0, %s159
      %s163 = sphi 0, %s162
      %s179 = sphi 0, %s163
      %s185 = sphi 0, %s187
      %s188 = sphi 0, %s185
      %s189 = sphi 0, %s188
      %s205 = sphi 0, %s189
      %s211 = sphi 0, %s213
      %s214 = sphi 0, %s211
      %s215 = sphi 0, %s214
      %s231 = sphi 0, %s215
    $region4: #{tpu_custom_call.1} parent=1 // loop_header_branch
      %32 = sbr.rel (%p30) target = $region8
    $region5: #{tpu_custom_call.1} parent=1 // loop_body
      %s34 = ssub.s32 %s29, 1
      %s35 = ssub.s32 %s29, 2
      %s36 = sadd.s32 %s29, 1
      %s37 = ssub.s32 %s29, %s36
      %p38 = scmp.eq.s32.totalorder %s37, 0
      %s40 = sadd.s32 %s39, 1
      %s41 = scalar_select %p38, %s39, %s40
      %p44 = pneg %p38
      %p45 = scmp.eq.s32.totalorder %s29, 1
      %p46 = por %p44, %p45
      %p47 = scmp.ne.s32.totalorder %s39, %s42
      %p48 = scmp.eq.s32.totalorder %s29, 0
      %p49 = por %p47, %p48
      %p50 = scmp.ne.s32.totalorder %s39, %s42
      %p51 = scmp.eq.s32.totalorder %s34, 1
      %p52 = por %p50, %p51
      %p53 = scmp.ne.s32.totalorder %s42, %s43
      %p54 = scmp.eq.s32.totalorder %s34, 0
      %p55 = por %p53, %p54
      %p56 = scmp.ne.s32.totalorder %s42, %s43
      %p57 = scmp.eq.s32.totalorder %s35, 1
      %p58 = por %p56, %p57
      %p60 = scmp.ne.s32.totalorder %s43, %s59
      %p61 = scmp.eq.s32.totalorder %s35, 0
      %p62 = por %p60, %p61
      %s64 = sadd.s32 %s63, 1
      %p67 = scmp.eq.s32.totalorder %s29, 1
      %p68 = scmp.ne.s32.totalorder %s63, %s65
      %p69 = scmp.eq.s32.totalorder %s29, 0
      %p70 = por %p68, %p69
      %p71 = scmp.ne.s32.totalorder %s63, %s65
      %p72 = scmp.eq.s32.totalorder %s34, 1
      %p73 = por %p71, %p72
      %p74 = scmp.ne.s32.totalorder %s65, %s66
      %p75 = scmp.eq.s32.totalorder %s34, 0
      %p76 = por %p74, %p75
      %p77 = scmp.ne.s32.totalorder %s65, %s66
      %p78 = scmp.eq.s32.totalorder %s35, 1
      %p79 = por %p77, %p78
      %p81 = scmp.ne.s32.totalorder %s66, %s80
      %p82 = scmp.eq.s32.totalorder %s35, 0
      %p83 = por %p81, %p82
      %s85 = sadd.s32 %s84, 1
      %p88 = scmp.eq.s32.totalorder %s29, 1
      %p89 = scmp.ne.s32.totalorder %s84, %s86
      %p90 = scmp.eq.s32.totalorder %s29, 0
      %p91 = por %p89, %p90
      %p92 = scmp.ne.s32.totalorder %s84, %s86
      %p93 = scmp.eq.s32.totalorder %s34, 1
      %p94 = por %p92, %p93
      %p95 = scmp.ne.s32.totalorder %s86, %s87
      %p96 = scmp.eq.s32.totalorder %s34, 0
      %p97 = por %p95, %p96
      %p98 = scmp.ne.s32.totalorder %s86, %s87
      %p99 = scmp.eq.s32.totalorder %s35, 1
      %p100 = por %p98, %p99
      %p102 = scmp.ne.s32.totalorder %s87, %s101
      %p103 = scmp.eq.s32.totalorder %s35, 0
      %p104 = por %p102, %p103
      %s105 = ssub.s32 %s29, %s36
      %p106 = scmp.eq.s32.totalorder %s105, 0
      %s108 = sadd.s32 %s107, 1
      %s109 = scalar_select %p106, %s107, %s108
      %p112 = pneg %p106
      %p113 = scmp.eq.s32.totalorder %s29, 1
      %p114 = por %p112, %p113
      %p115 = scmp.ne.s32.totalorder %s107, %s110
      %p116 = scmp.eq.s32.totalorder %s29, 0
      %p117 = por %p115, %p116
      %p118 = scmp.ne.s32.totalorder %s107, %s110
      %p119 = scmp.eq.s32.totalorder %s34, 1
      %p120 = por %p118, %p119
      %p121 = scmp.ne.s32.totalorder %s110, %s111
      %p122 = scmp.eq.s32.totalorder %s34, 0
      %p123 = por %p121, %p122
      %p124 = scmp.ne.s32.totalorder %s110, %s111
      %p125 = scmp.eq.s32.totalorder %s35, 1
      %p126 = por %p124, %p125
      %p128 = scmp.ne.s32.totalorder %s111, %s127
      %p129 = scmp.eq.s32.totalorder %s35, 0
      %p130 = por %p128, %p129
      %s131 = ssub.s32 %s29, %s36
      %p132 = scmp.eq.s32.totalorder %s131, 0
      %s134 = sadd.s32 %s133, 1
      %s135 = scalar_select %p132, %s133, %s134
      %p138 = pneg %p132
      %p139 = scmp.eq.s32.totalorder %s29, 1
      %p140 = por %p138, %p139
      %p141 = scmp.ne.s32.totalorder %s133, %s136
      %p142 = scmp.eq.s32.totalorder %s29, 0
      %p143 = por %p141, %p142
      %p144 = scmp.ne.s32.totalorder %s133, %s136
      %p145 = scmp.eq.s32.totalorder %s34, 1
      %p146 = por %p144, %p145
      %p147 = scmp.ne.s32.totalorder %s136, %s137
      %p148 = scmp.eq.s32.totalorder %s34, 0
      %p149 = por %p147, %p148
      %p150 = scmp.ne.s32.totalorder %s136, %s137
      %p151 = scmp.eq.s32.totalorder %s35, 1
      %p152 = por %p150, %p151
      %p154 = scmp.ne.s32.totalorder %s137, %s153
      %p155 = scmp.eq.s32.totalorder %s35, 0
      %p156 = por %p154, %p155
      %s157 = ssub.s32 %s29, %s36
      %p158 = scmp.eq.s32.totalorder %s157, 0
      %s160 = sadd.s32 %s159, 1
      %s161 = scalar_select %p158, %s159, %s160
      %p164 = pneg %p158
      %p165 = scmp.eq.s32.totalorder %s29, 1
      %p166 = por %p164, %p165
      %p167 = scmp.ne.s32.totalorder %s159, %s162
      %p168 = scmp.eq.s32.totalorder %s29, 0
      %p169 = por %p167, %p168
      %p170 = scmp.ne.s32.totalorder %s159, %s162
      %p171 = scmp.eq.s32.totalorder %s34, 1
      %p172 = por %p170, %p171
      %p173 = scmp.ne.s32.totalorder %s162, %s163
      %p174 = scmp.eq.s32.totalorder %s34, 0
      %p175 = por %p173, %p174
      %p176 = scmp.ne.s32.totalorder %s162, %s163
      %p177 = scmp.eq.s32.totalorder %s35, 1
      %p178 = por %p176, %p177
      %p180 = scmp.ne.s32.totalorder %s163, %s179
      %p181 = scmp.eq.s32.totalorder %s35, 0
      %p182 = por %p180, %p181
      %s183 = ssub.s32 %s29, %s36
      %p184 = scmp.eq.s32.totalorder %s183, 0
      %s186 = sadd.s32 %s185, 1
      %s187 = scalar_select %p184, %s185, %s186
      %p190 = pneg %p184
      %p191 = scmp.eq.s32.totalorder %s29, 1
      %p192 = por %p190, %p191
      %p193 = scmp.ne.s32.totalorder %s185, %s188
      %p194 = scmp.eq.s32.totalorder %s29, 0
      %p195 = por %p193, %p194
      %p196 = scmp.ne.s32.totalorder %s185, %s188
      %p197 = scmp.eq.s32.totalorder %s34, 1
      %p198 = por %p196, %p197
      %p199 = scmp.ne.s32.totalorder %s188, %s189
      %p200 = scmp.eq.s32.totalorder %s34, 0
      %p201 = por %p199, %p200
      %p202 = scmp.ne.s32.totalorder %s188, %s189
      %p203 = scmp.eq.s32.totalorder %s35, 1
      %p204 = por %p202, %p203
      %p206 = scmp.ne.s32.totalorder %s189, %s205
      %p207 = scmp.eq.s32.totalorder %s35, 0
      %p208 = por %p206, %p207
      %s209 = ssub.s32 %s29, %s36
      %p210 = scmp.eq.s32.totalorder %s209, 0
      %s212 = sadd.s32 %s211, 1
      %s213 = scalar_select %p210, %s211, %s212
      %p216 = pneg %p210
      %p217 = scmp.eq.s32.totalorder %s29, 1
      %p218 = por %p216, %p217
      %p219 = scmp.ne.s32.totalorder %s211, %s214
      %p220 = scmp.eq.s32.totalorder %s29, 0
      %p221 = por %p219, %p220
      %p222 = scmp.ne.s32.totalorder %s211, %s214
      %p223 = scmp.eq.s32.totalorder %s34, 1
      %p224 = por %p222, %p223
      %p225 = scmp.ne.s32.totalorder %s214, %s215
      %p226 = scmp.eq.s32.totalorder %s34, 0
      %p227 = por %p225, %p226
      %p228 = scmp.ne.s32.totalorder %s214, %s215
      %p229 = scmp.eq.s32.totalorder %s35, 1
      %p230 = por %p228, %p229
      %p232 = scmp.ne.s32.totalorder %s215, %s231
      %p233 = scmp.eq.s32.totalorder %s35, 0
      %p234 = por %p232, %p233
      %p235 = scmp.le.s32.totalorder 1, %s29
      %p236 = scmp.lt.s32.totalorder %s29, 3
      %p237 = pnand %p235, %p236
      %p238 = pneg %p237
      // Predicated region
      $region9: #{tpu_custom_call.1} parent=5 // pred_check
        _
      $region10: #{tpu_custom_call.1} parent=5 // pred_check_branch
        %240 = sbr.rel (%p237) target = $region12
      $region11: #{tpu_custom_call.1} parent=5 // pred_region
        %s241 = ssub.s32 %s29, 1
        // Predicated region
        $region13: #{tpu_custom_call.1} parent=11 // pred_check
          %p242 = pneg %p76
        $region14: #{tpu_custom_call.1} parent=11 // pred_check_branch
          %244 = sbr.rel (%p242) target = $region16
        $region15: #{tpu_custom_call.1} parent=11 // pred_region
          _
        $region16: #{tpu_custom_call.1} parent=11 // pred_fallthru
          _
        // Predicated region
        $region17: #{tpu_custom_call.1} parent=11 // pred_check
          %p245 = pneg %p97
        $region18: #{tpu_custom_call.1} parent=11 // pred_check_branch
          %247 = sbr.rel (%p245) target = $region20
        $region19: #{tpu_custom_call.1} parent=11 // pred_region
          _
        $region20: #{tpu_custom_call.1} parent=11 // pred_fallthru
          _
      $region12: #{tpu_custom_call.1} parent=5 // pred_fallthru
        _
      %p248 = scmp.lt.s32.totalorder %s29, 2
      // Predicated region
      $region21: #{tpu_custom_call.1} parent=5 // pred_check
        %p249 = pneg %p248
      $region22: #{tpu_custom_call.1} parent=5 // pred_check_branch
        %251 = sbr.rel (%p249) target = $region24
      $region23: #{tpu_custom_call.1} parent=5 // pred_region
        // Predicated region
        $region25: #{tpu_custom_call.1} parent=23 // pred_check
          %p252 = pneg %p49
        $region26: #{tpu_custom_call.1} parent=23 // pred_check_branch
          %254 = sbr.rel (%p252) target = $region28
        $region27: #{tpu_custom_call.1} parent=23 // pred_region
          %s255 = sand.u32 %s39, 1
          %s256 = scalar_lea.sflag [#allocation3], %s255
          %s257 = sand.u32 %s39, 1
          %s258 = smul.addr %s257, 32
          %s259 = scalar_lea.vmem [#allocation2], %s258
          %s261 = ssub.s32 512, 512
          %262 = vsyncadd %s256, %s261
          %s263 = smul.addr %s29, 128
          %s264 = scalar_lea.hbm %s0, %s263
          %s265 = sshll.u32 %s259, 4
          %s266 = int_to_ptr.vmem [resolvable:$true] %s265
          %271 = dma.hbm_to_vmem [thread:$0]  %s264, 512, %s266, %s256, 256, 128, 8
        $region28: #{tpu_custom_call.1} parent=23 // pred_fallthru
          _
        // Predicated region
        $region29: #{tpu_custom_call.1} parent=23 // pred_check
          %p272 = pneg %p117
        $region30: #{tpu_custom_call.1} parent=23 // pred_check_branch
          %274 = sbr.rel (%p272) target = $region32
        $region31: #{tpu_custom_call.1} parent=23 // pred_region
          %s275 = sand.u32 %s29, 1
          %s276 = scalar_lea.sflag [#allocation6], %s275
          %s277 = sand.u32 %s107, 1
          %s278 = smul.addr %s277, 256
          %s279 = scalar_lea.vmem [#allocation5], %s278
          %s281 = ssub.s32 4096, 4096
          %282 = vsyncadd %s276, %s281
          %s283 = smul.addr %s29, 128
          %s284 = scalar_lea.hbm %s3, %s283
          %s285 = sshll.u32 %s279, 4
          %s286 = int_to_ptr.vmem [resolvable:$true] %s285
          %291 = dma.hbm_to_vmem [thread:$0]  %s284, 4096, %s286, %s276, 256, 128, 8
        $region32: #{tpu_custom_call.1} parent=23 // pred_fallthru
          _
        // Predicated region
        $region33: #{tpu_custom_call.1} parent=23 // pred_check
          %p292 = pneg %p143
        $region34: #{tpu_custom_call.1} parent=23 // pred_check_branch
          %294 = sbr.rel (%p292) target = $region36
        $region35: #{tpu_custom_call.1} parent=23 // pred_region
          %s295 = sand.u32 %s29, 1
          %s296 = scalar_lea.sflag [#allocation6], %s295
          %s297 = sand.u32 %s133, 1
          %s298 = smul.addr %s297, 512
          %s299 = scalar_lea.vmem [#allocation7], %s298
          %s301 = ssub.s32 8192, 8192
          %302 = vsyncadd %s296, %s301
          %s303 = smul.addr %s29, 128
          %s304 = scalar_lea.hbm %s4, %s303
          %s305 = sshll.u32 %s299, 4
          %s306 = int_to_ptr.vmem [resolvable:$true] %s305
          %311 = dma.hbm_to_vmem [thread:$0]  %s304, 8192, %s306, %s296, 256, 128, 8
        $region36: #{tpu_custom_call.1} parent=23 // pred_fallthru
          _
        // Predicated region
        $region37: #{tpu_custom_call.1} parent=23 // pred_check
          %p312 = pneg %p169
        $region38: #{tpu_custom_call.1} parent=23 // pred_check_branch
          %314 = sbr.rel (%p312) target = $region40
        $region39: #{tpu_custom_call.1} parent=23 // pred_region
          %s315 = sand.u32 %s159, 1
          %s316 = scalar_lea.sflag [#allocation9], %s315
          %s317 = sand.u32 %s159, 1
          %s318 = smul.addr %s317, 8
          %s319 = scalar_lea.vmem [#allocation8], %s318
          %s321 = ssub.s32 128, 128
          %322 = vsyncadd %s316, %s321
          %s323 = smul.addr %s29, 128
          %s324 = scalar_lea.hbm %s5, %s323
          %s326 = sshll.u32 %s319, 4
          %s327 = int_to_ptr.vmem [resolvable:$true] %s326
          %329 = dma.hbm_to_vmem [thread:$0]  %s324, 128, %s327, %s316
        $region40: #{tpu_custom_call.1} parent=23 // pred_fallthru
          _
      $region24: #{tpu_custom_call.1} parent=5 // pred_fallthru
        _
      %p330 = scmp.le.s32.totalorder 1, %s29
      %p331 = scmp.lt.s32.totalorder %s29, 3
      %p332 = pnand %p330, %p331
      %p333 = pneg %p332
      // Predicated region
      $region41: #{tpu_custom_call.1} parent=5 // pred_check
        _
      $region42: #{tpu_custom_call.1} parent=5 // pred_check_branch
        %335 = sbr.rel (%p332) target = $region44
      $region43: #{tpu_custom_call.1} parent=5 // pred_region
        %s336 = ssub.s32 %s29, 1
        %s337 = sand.u32 %s42, 1
        %s338 = scalar_lea.sflag [#allocation3], %s337
        %s339 = sand.u32 %s42, 1
        %s340 = smul.addr %s339, 32
        %s341 = scalar_lea.vmem [#allocation2], %s340
        // Predicated region
        $region45: #{tpu_custom_call.1} parent=43 // pred_check
          %p342 = pneg %p55
        $region46: #{tpu_custom_call.1} parent=43 // pred_check_branch
          %344 = sbr.rel (%p342) target = $region48
        $region47: #{tpu_custom_call.1} parent=43 // pred_region
          %345 = dma.done %s338, 512
        $region48: #{tpu_custom_call.1} parent=43 // pred_fallthru
          _
        %s346 = sand.u32 %s34, 1
        %s347 = scalar_lea.sflag [#allocation6], %s346
        %s348 = sand.u32 %s110, 1
        %s349 = smul.addr %s348, 256
        %s350 = scalar_lea.vmem [#allocation5], %s349
        // Predicated region
        $region49: #{tpu_custom_call.1} parent=43 // pred_check
          %p351 = pneg %p123
        $region50: #{tpu_custom_call.1} parent=43 // pred_check_branch
          %353 = sbr.rel (%p351) target = $region52
        $region51: #{tpu_custom_call.1} parent=43 // pred_region
          %354 = dma.done %s347, 4096
        $region52: #{tpu_custom_call.1} parent=43 // pred_fallthru
          _
        %s355 = sand.u32 %s34, 1
        %s356 = scalar_lea.sflag [#allocation6], %s355
        %s357 = sand.u32 %s136, 1
        %s358 = smul.addr %s357, 512
        %s359 = scalar_lea.vmem [#allocation7], %s358
        // Predicated region
        $region53: #{tpu_custom_call.1} parent=43 // pred_check
          %p360 = pneg %p149
        $region54: #{tpu_custom_call.1} parent=43 // pred_check_branch
          %362 = sbr.rel (%p360) target = $region56
        $region55: #{tpu_custom_call.1} parent=43 // pred_region
          %363 = dma.done %s356, 8192
        $region56: #{tpu_custom_call.1} parent=43 // pred_fallthru
          _
        %s364 = sand.u32 %s162, 1
        %s365 = scalar_lea.sflag [#allocation9], %s364
        %s366 = sand.u32 %s162, 1
        %s367 = smul.addr %s366, 8
        %s368 = scalar_lea.vmem [#allocation8], %s367
        // Predicated region
        $region57: #{tpu_custom_call.1} parent=43 // pred_check
          %p369 = pneg %p175
        $region58: #{tpu_custom_call.1} parent=43 // pred_check_branch
          %371 = sbr.rel (%p369) target = $region60
        $region59: #{tpu_custom_call.1} parent=43 // pred_region
          %372 = dma.done %s365, 128
        $region60: #{tpu_custom_call.1} parent=43 // pred_fallthru
          _
        %s373 = sand.u32 %s42, 1
        %s374 = scalar_lea.sflag [#allocation3], %s373
        %s375 = sand.u32 %s42, 1
        %s376 = smul.addr %s375, 32
        %s377 = scalar_lea.vmem [#allocation2], %s376
        %p378 = pneg %p55
        %p379 = pneg %p52
        %p380 = pneg %p76
        %p381 = pneg %p73
        %p382 = pneg %p97
        %p383 = pneg %p94
        %s384 = sand.u32 %s34, 1
        %s385 = scalar_lea.sflag [#allocation6], %s384
        %s386 = sand.u32 %s110, 1
        %s387 = smul.addr %s386, 256
        %s388 = scalar_lea.vmem [#allocation5], %s387
        %p389 = pneg %p123
        %p390 = pneg %p120
        %s391 = sand.u32 %s34, 1
        %s392 = scalar_lea.sflag [#allocation6], %s391
        %s393 = sand.u32 %s136, 1
        %s394 = smul.addr %s393, 512
        %s395 = scalar_lea.vmem [#allocation7], %s394
        %p396 = pneg %p149
        %p397 = pneg %p146
        %s398 = sand.u32 %s162, 1
        %s399 = scalar_lea.sflag [#allocation9], %s398
        %s400 = sand.u32 %s162, 1
        %s401 = smul.addr %s400, 8
        %s402 = scalar_lea.vmem [#allocation8], %s401
        %p403 = pneg %p175
        %p404 = pneg %p172
        %p405 = pneg %p201
        %p406 = pneg %p198
        %s407 = sand.u32 %s188, 1
        %s408 = scalar_lea.sflag [#allocation4], %s407
        %s409 = sand.u32 %s188, 1
        %s410 = smul.addr %s409, 64
        %s411 = scalar_lea.vmem [#allocation10], %s410
        %p412 = pneg %p227
        %p413 = pneg %p224
        %s414 = sand.u32 %s214, 1
        %s415 = scalar_lea.sflag [#allocation12], %s414
        %s416 = sand.u32 %s214, 1
        %s417 = smul.addr %s416, 8
        %s418 = scalar_lea.vmem [#allocation11], %s417
        %v419 = vld [vmem:[%s1] sm:$0xff]
        %v420 = vld [vmem:[%s1 + $0x8] sm:$0xff]
        %v421 = vld [vmem:[%s1 + $0x10] sm:$0xff]
        %v422 = vld [vmem:[%s1 + $0x18] sm:$0xff]
        %v423 = vld [vmem:[%s341] sm:$0xff]
        %v424 = vld [vmem:[%s341 + $0x8] sm:$0xff]
        %v425 = vld [vmem:[%s341 + $0x10] sm:$0xff]
        %v426 = vld [vmem:[%s341 + $0x18] sm:$0xff]
        %vm427 = vcmask 261120
        %v429 = vsel %vm427, %v419, 0
        %v432 = vsel %vm427, %v420, 0
        %v435 = vsel %vm427, %v421, 0
        %v438 = vsel %vm427, %v422, 0
        %440 = vmatprep.subr.mxu0 0.0
        %441 = vmatpush1.msra.mxu0 0.0
        %442 = vmatprep.subr.mxu0 0.0
        %443 = vmatpush1.msra.mxu0 0.0
        %444 = vmatprep.subr.mxu0 0.0
        %445 = vmatpush1.msra.mxu0 0.0
        %446 = vmatprep.subr.mxu0 0.0
        %447 = vmatpush1.msra.mxu0 0.0
        %448 = vmatprep.subr.mxu0 0.0
        %449 = vmatpush1.msra.mxu0 0.0
        %450 = vmatprep.subr.mxu0 0.0
        %451 = vmatpush1.msra.mxu0 0.0
        %452 = vmatprep.subr.mxu0 0.0
        %453 = vmatpush1.msra.mxu0 0.0
        %454 = vmatprep.subr.mxu0 0.0
        %455 = vmatpush1.msra.mxu0 0.0
        %456 = vmatprep.subr.mxu0 0.0
        %457 = vmatpush1.msra.mxu0 0.0
        %458 = vmatprep.subr.mxu0 0.0
        %459 = vmatpush1.msra.mxu0 0.0
        %460 = vmatprep.subr.mxu0 0.0
        %461 = vmatpush1.msra.mxu0 0.0
        %462 = vmatprep.subr.mxu0 0.0
        %463 = vmatpush1.msra.mxu0 0.0
        %464 = vmatprep.subr.mxu0 0.0
        %465 = vmatpush1.msra.mxu0 %v426
        %466 = vmatprep.subr.mxu0 0.0
        %467 = vmatpush1.msra.mxu0 %v425
        %468 = vmatprep.subr.mxu0 0.0
        %469 = vmatpush1.msra.mxu0 %v424
        %470 = vmatprep.subr.mxu0 0.0
        %471 = vmatpush1.msra.mxu0 %v423
        %472 = vmatprep.subr.mxu0 0.0
        %473 = vmatpush2.msra.mxu0 0.0
        %474 = vmatprep.subr.mxu0 0.0
        %475 = vmatpush2.msra.mxu0 0.0
        %476 = vmatprep.subr.mxu0 0.0
        %477 = vmatpush2.msra.mxu0 0.0
        %478 = vmatprep.subr.mxu0 0.0
        %479 = vmatpush2.msra.mxu0 0.0
        %480 = vmatprep.subr.mxu0 0.0
        %481 = vmatpush2.msra.mxu0 0.0
        %482 = vmatprep.subr.mxu0 0.0
        %483 = vmatpush2.msra.mxu0 0.0
        %484 = vmatprep.subr.mxu0 0.0
        %485 = vmatpush2.msra.mxu0 0.0
        %486 = vmatprep.subr.mxu0 0.0
        %487 = vmatpush2.msra.mxu0 0.0
        %488 = vmatprep.subr.mxu0 0.0
        %489 = vmatpush2.msra.mxu0 0.0
        %490 = vmatprep.subr.mxu0 0.0
        %491 = vmatpush2.msra.mxu0 0.0
        %492 = vmatprep.subr.mxu0 0.0
        %493 = vmatpush2.msra.mxu0 0.0
        %494 = vmatprep.subr.mxu0 0.0
        %495 = vmatpush2.msra.mxu0 0.0
        %496 = vmatprep.subr.mxu0 0.0
        %497 = vmatpush2.msra.mxu0 0.0
        %498 = vmatprep.subr.mxu0 0.0
        %499 = vmatpush2.msra.mxu0 0.0
        %500 = vmatprep.subr.mxu0 0.0
        %501 = vmatpush2.msra.mxu0 0.0
        %502 = vmatprep.subr.mxu0 0.0
        %503 = vmatpush2.msra.mxu0 0.0
        %504 = vmatprep.mubr.f32.mxu0 0.0
        %505 = vmatmul.mubr.f32.gmra.mxu0 %v429
        %v506 = vpop.f32.mrf.mxu0
        %v507 = vadd.f32 0.0, %v506
        %v508 = vpop.f32.mrf.mxu0
        %509 = vmatprep.mubr.f32.mxu0 0.0
        %510 = vmatmul.mubr.f32.gmra.mxu0 %v432
        %v511 = vpop.f32.mrf.mxu0
        %v512 = vadd.f32 0.0, %v511
        %v513 = vpop.f32.mrf.mxu0
        %514 = vmatprep.mubr.f32.mxu0 0.0
        %515 = vmatmul.mubr.f32.gmra.mxu0 %v435
        %v516 = vpop.f32.mrf.mxu0
        %v517 = vadd.f32 0.0, %v516
        %v518 = vpop.f32.mrf.mxu0
        %519 = vmatprep.mubr.f32.mxu0 0.0
        %520 = vmatmul.mubr.f32.gmra.mxu0 %v438
        %v521 = vpop.f32.mrf.mxu0
        %v522 = vadd.f32 0.0, %v521
        %v523 = vpop.f32.mrf.mxu0
        %524 = vdwg.mxu0
        %v525 = vld [vmem:[%s2] sm:$0xff]
        %v526 = vld [vmem:[%s2 + $0x8] sm:$0xff]
        %v527 = vld [vmem:[%s2 + $0x10] sm:$0xff]
        %v528 = vld [vmem:[%s2 + $0x18] sm:$0xff]
        %v529 = vld [vmem:[%s350] sm:$0xff]
        %v530 = vld [vmem:[%s350 + $0x8] sm:$0xff]
        %v531 = vld [vmem:[%s350 + $0x10] sm:$0xff]
        %v532 = vld [vmem:[%s350 + $0x18] sm:$0xff]
        %v533 = vadd.f32 %v507, %v529
        %v534 = vadd.f32 %v512, %v530
        %v535 = vadd.f32 %v517, %v531
        %v536 = vadd.f32 %v522, %v532
        %v537 = vtanh.pop %v533
        %v538 = vtanh.pop %v534
        %v539 = vtanh.pop %v535
        %v540 = vtanh.pop %v536
        %542 = vset.pattern.permute.xlu0 0
        %543 = vperm.xlu0 %542, %v525
        %v544 = vpop.permute.xlu0 %543
        %547 = vset.pattern.permute.xlu0 0
        %548 = vperm.xlu0 %547, %v526
        %v549 = vpop.permute.xlu0 %548
        %552 = vset.pattern.permute.xlu0 0
        %553 = vperm.xlu0 %552, %v527
        %v554 = vpop.permute.xlu0 %553
        %557 = vset.pattern.permute.xlu0 0
        %558 = vperm.xlu0 %557, %v528
        %v559 = vpop.permute.xlu0 %558
        %v561 = vmul.f32 %v544, %v537
        %v562 = vmul.f32 %v549, %v538
        %v563 = vmul.f32 %v554, %v539
        %v564 = vmul.f32 %v559, %v540
        %v565 = vadd.f32 %v561, %v562
        %v566 = vadd.f32 %v565, %v563
        %v567 = vadd.f32 %v566, %v564
        %v568 = vrot.slane %v567, 4
        %v569 = vadd.f32 %v567, %v568
        %v570 = vrot.slane %v569, 2
        %v571 = vadd.f32 %v569, %v570
        %v572 = vrot.slane %v571, 1
        %v573 = vadd.f32 %v571, %v572
        %s574 = scalar_lea.vmem %s350, 32 [#allocation5]
        %v575 = vld [vmem:[%s574] sm:$0xff]
        %v576 = vld [vmem:[%s574 + $0x8] sm:$0xff]
        %v577 = vld [vmem:[%s574 + $0x10] sm:$0xff]
        %v578 = vld [vmem:[%s574 + $0x18] sm:$0xff]
        %v579 = vadd.f32 %v507, %v575
        %v580 = vadd.f32 %v512, %v576
        %v581 = vadd.f32 %v517, %v577
        %v582 = vadd.f32 %v522, %v578
        %v583 = vtanh.pop %v579
        %v584 = vtanh.pop %v580
        %v585 = vtanh.pop %v581
        %v586 = vtanh.pop %v582
        %v587 = vmul.f32 %v544, %v583
        %v588 = vmul.f32 %v549, %v584
        %v589 = vmul.f32 %v554, %v585
        %v590 = vmul.f32 %v559, %v586
        %v591 = vadd.f32 %v587, %v588
        %v592 = vadd.f32 %v591, %v589
        %v593 = vadd.f32 %v592, %v590
        %v594 = vrot.slane %v593, 4
        %v595 = vadd.f32 %v593, %v594
        %v596 = vrot.slane %v595, 2
        %v597 = vadd.f32 %v595, %v596
        %v598 = vrot.slane %v597, 1
        %v599 = vadd.f32 %v597, %v598
        %s600 = scalar_lea.vmem %s350, 64 [#allocation5]
        %v601 = vld [vmem:[%s600] sm:$0xff]
        %v602 = vld [vmem:[%s600 + $0x8] sm:$0xff]
        %v603 = vld [vmem:[%s600 + $0x10] sm:$0xff]
        %v604 = vld [vmem:[%s600 + $0x18] sm:$0xff]
        %v605 = vadd.f32 %v507, %v601
        %v606 = vadd.f32 %v512, %v602
        %v607 = vadd.f32 %v517, %v603
        %v608 = vadd.f32 %v522, %v604
        %v609 = vtanh.pop %v605
        %v610 = vtanh.pop %v606
        %v611 = vtanh.pop %v607
        %v612 = vtanh.pop %v608
        %v613 = vmul.f32 %v544, %v609
        %v614 = vmul.f32 %v549, %v610
        %v615 = vmul.f32 %v554, %v611
        %v616 = vmul.f32 %v559, %v612
        %v617 = vadd.f32 %v613, %v614
        %v618 = vadd.f32 %v617, %v615
        %v619 = vadd.f32 %v618, %v616
        %v620 = vrot.slane %v619, 4
        %v621 = vadd.f32 %v619, %v620
        %v622 = vrot.slane %v621, 2
        %v623 = vadd.f32 %v621, %v622
        %v624 = vrot.slane %v623, 1
        %v625 = vadd.f32 %v623, %v624
        %s626 = scalar_lea.vmem %s350, 96 [#allocation5]
        %v627 = vld [vmem:[%s626] sm:$0xff]
        %v628 = vld [vmem:[%s626 + $0x8] sm:$0xff]
        %v629 = vld [vmem:[%s626 + $0x10] sm:$0xff]
        %v630 = vld [vmem:[%s626 + $0x18] sm:$0xff]
        %v631 = vadd.f32 %v507, %v627
        %v632 = vadd.f32 %v512, %v628
        %v633 = vadd.f32 %v517, %v629
        %v634 = vadd.f32 %v522, %v630
        %v635 = vtanh.pop %v631
        %v636 = vtanh.pop %v632
        %v637 = vtanh.pop %v633
        %v638 = vtanh.pop %v634
        %v639 = vmul.f32 %v544, %v635
        %v640 = vmul.f32 %v549, %v636
        %v641 = vmul.f32 %v554, %v637
        %v642 = vmul.f32 %v559, %v638
        %v643 = vadd.f32 %v639, %v640
        %v644 = vadd.f32 %v643, %v641
        %v645 = vadd.f32 %v644, %v642
        %v646 = vrot.slane %v645, 4
        %v647 = vadd.f32 %v645, %v646
        %v648 = vrot.slane %v647, 2
        %v649 = vadd.f32 %v647, %v648
        %v650 = vrot.slane %v649, 1
        %v651 = vadd.f32 %v649, %v650
        %s652 = scalar_lea.vmem %s350, 128 [#allocation5]
        %v653 = vld [vmem:[%s652] sm:$0xff]
        %v654 = vld [vmem:[%s652 + $0x8] sm:$0xff]
        %v655 = vld [vmem:[%s652 + $0x10] sm:$0xff]
        %v656 = vld [vmem:[%s652 + $0x18] sm:$0xff]
        %v657 = vadd.f32 %v507, %v653
        %v658 = vadd.f32 %v512, %v654
        %v659 = vadd.f32 %v517, %v655
        %v660 = vadd.f32 %v522, %v656
        %v661 = vtanh.pop %v657
        %v662 = vtanh.pop %v658
        %v663 = vtanh.pop %v659
        %v664 = vtanh.pop %v660
        %v665 = vmul.f32 %v544, %v661
        %v666 = vmul.f32 %v549, %v662
        %v667 = vmul.f32 %v554, %v663
        %v668 = vmul.f32 %v559, %v664
        %v669 = vadd.f32 %v665, %v666
        %v670 = vadd.f32 %v669, %v667
        %v671 = vadd.f32 %v670, %v668
        %v672 = vrot.slane %v671, 4
        %v673 = vadd.f32 %v671, %v672
        %v674 = vrot.slane %v673, 2
        %v675 = vadd.f32 %v673, %v674
        %v676 = vrot.slane %v675, 1
        %v677 = vadd.f32 %v675, %v676
        %s678 = scalar_lea.vmem %s350, 160 [#allocation5]
        %v679 = vld [vmem:[%s678] sm:$0xff]
        %v680 = vld [vmem:[%s678 + $0x8] sm:$0xff]
        %v681 = vld [vmem:[%s678 + $0x10] sm:$0xff]
        %v682 = vld [vmem:[%s678 + $0x18] sm:$0xff]
        %v683 = vadd.f32 %v507, %v679
        %v684 = vadd.f32 %v512, %v680
        %v685 = vadd.f32 %v517, %v681
        %v686 = vadd.f32 %v522, %v682
        %v687 = vtanh.pop %v683
        %v688 = vtanh.pop %v684
        %v689 = vtanh.pop %v685
        %v690 = vtanh.pop %v686
        %v691 = vmul.f32 %v544, %v687
        %v692 = vmul.f32 %v549, %v688
        %v693 = vmul.f32 %v554, %v689
        %v694 = vmul.f32 %v559, %v690
        %v695 = vadd.f32 %v691, %v692
        %v696 = vadd.f32 %v695, %v693
        %v697 = vadd.f32 %v696, %v694
        %v698 = vrot.slane %v697, 4
        %v699 = vadd.f32 %v697, %v698
        %v700 = vrot.slane %v699, 2
        %v701 = vadd.f32 %v699, %v700
        %v702 = vrot.slane %v701, 1
        %v703 = vadd.f32 %v701, %v702
        %s704 = scalar_lea.vmem %s350, 192 [#allocation5]
        %v705 = vld [vmem:[%s704] sm:$0xff]
        %v706 = vld [vmem:[%s704 + $0x8] sm:$0xff]
        %v707 = vld [vmem:[%s704 + $0x10] sm:$0xff]
        %v708 = vld [vmem:[%s704 + $0x18] sm:$0xff]
        %v709 = vadd.f32 %v507, %v705
        %v710 = vadd.f32 %v512, %v706
        %v711 = vadd.f32 %v517, %v707
        %v712 = vadd.f32 %v522, %v708
        %v713 = vtanh.pop %v709
        %v714 = vtanh.pop %v710
        %v715 = vtanh.pop %v711
        %v716 = vtanh.pop %v712
        %v717 = vmul.f32 %v544, %v713
        %v718 = vmul.f32 %v549, %v714
        %v719 = vmul.f32 %v554, %v715
        %v720 = vmul.f32 %v559, %v716
        %v721 = vadd.f32 %v717, %v718
        %v722 = vadd.f32 %v721, %v719
        %v723 = vadd.f32 %v722, %v720
        %v724 = vrot.slane %v723, 4
        %v725 = vadd.f32 %v723, %v724
        %v726 = vrot.slane %v725, 2
        %v727 = vadd.f32 %v725, %v726
        %v728 = vrot.slane %v727, 1
        %v729 = vadd.f32 %v727, %v728
        %s730 = scalar_lea.vmem %s350, 224 [#allocation5]
        %v731 = vld [vmem:[%s730] sm:$0xff]
        %v732 = vld [vmem:[%s730 + $0x8] sm:$0xff]
        %v733 = vld [vmem:[%s730 + $0x10] sm:$0xff]
        %v734 = vld [vmem:[%s730 + $0x18] sm:$0xff]
        %v735 = vadd.f32 %v507, %v731
        %v736 = vadd.f32 %v512, %v732
        %v737 = vadd.f32 %v517, %v733
        %v738 = vadd.f32 %v522, %v734
        %v739 = vtanh.pop %v735
        %v740 = vtanh.pop %v736
        %v741 = vtanh.pop %v737
        %v742 = vtanh.pop %v738
        %v743 = vmul.f32 %v544, %v739
        %v744 = vmul.f32 %v549, %v740
        %v745 = vmul.f32 %v554, %v741
        %v746 = vmul.f32 %v559, %v742
        %v747 = vadd.f32 %v743, %v744
        %v748 = vadd.f32 %v747, %v745
        %v749 = vadd.f32 %v748, %v746
        %v750 = vrot.slane %v749, 4
        %v751 = vadd.f32 %v749, %v750
        %v752 = vrot.slane %v751, 2
        %v753 = vadd.f32 %v751, %v752
        %v754 = vrot.slane %v753, 1
        %v755 = vadd.f32 %v753, %v754
        %vm756 = vcmask 1040384
        %v757 = vsel %vm756, %v573, %v599
        %vm758 = vcmask 1041408
        %v759 = vsel %vm758, %v757, %v625
        %vm760 = vcmask 1042432
        %v761 = vsel %vm760, %v759, %v651
        %vm762 = vcmask 1043456
        %v763 = vsel %vm762, %v761, %v677
        %vm764 = vcmask 1044480
        %v765 = vsel %vm764, %v763, %v703
        %vm766 = vcmask 1045504
        %v767 = vsel %vm766, %v765, %v729
        %vm768 = vcmask 1046528
        %v769 = vsel %vm768, %v767, %v755
        %v770 = vld [vmem:[%s368] sm:$0xff]
        %vm771 = vcmp.eq.s32.totalorder %v770, 0
        %v772 = vsel %vm771, -inf, %v769
        %v773 = vrot.slane %v772, 4
        %v774 = vmax.f32 %v772, %v773
        %v775 = vrot.slane %v774, 2
        %v776 = vmax.f32 %v774, %v775
        %v777 = vrot.slane %v776, 1
        %v778 = vmax.f32 %v776, %v777
        %v779 = vsub.f32 %v772, %v778
        %v780 = vmul.f32 %v779, 1.442695
        %v781 = vpow.pop %v780
        %v782 = vrot.slane %v781, 4
        %v783 = vadd.f32 %v781, %v782
        %v784 = vrot.slane %v783, 2
        %v785 = vadd.f32 %v783, %v784
        %v786 = vrot.slane %v785, 1
        %v787 = vadd.f32 %v785, %v786
        %v788 = vrcp.pop %v787
        %v789 = vmul.f32 %v781, %v788
        %v790 = vld [vmem:[%s359] sm:$0xff]
        %v791 = vld [vmem:[%s359 + $0x8] sm:$0xff]
        %v792 = vld [vmem:[%s359 + $0x10] sm:$0xff]
        %v793 = vld [vmem:[%s359 + $0x18] sm:$0xff]
        %v794 = vld [vmem:[%s359 + $0x20] sm:$0xff]
        %v795 = vld [vmem:[%s359 + $0x28] sm:$0xff]
        %v796 = vld [vmem:[%s359 + $0x30] sm:$0xff]
        %v797 = vld [vmem:[%s359 + $0x38] sm:$0xff]
        %v798 = vlaneseq
        %v799 = vshrl.u32 %v798, 7
        %v800 = vsub.s32 0, %v799
        %v801 = vrot.slane %v789, %v800
        %v802 = vmul.f32 %v801, %v790
        %v803 = vmul.f32 %v801, %v791
        %v804 = vmul.f32 %v801, %v792
        %v805 = vmul.f32 %v801, %v793
        %v806 = vmul.f32 %v801, %v794
        %v807 = vmul.f32 %v801, %v795
        %v808 = vmul.f32 %v801, %v796
        %v809 = vmul.f32 %v801, %v797
        %v810 = vadd.f32 %v802, 0.0
        %v811 = vadd.f32 %v803, 0.0
        %v812 = vadd.f32 %v804, 0.0
        %v813 = vadd.f32 %v805, 0.0
        %v814 = vadd.f32 %v806, 0.0
        %v815 = vadd.f32 %v807, 0.0
        %v816 = vadd.f32 %v808, 0.0
        %v817 = vadd.f32 %v809, 0.0
        %s818 = scalar_lea.vmem %s359, 64 [#allocation7]
        %v819 = vld [vmem:[%s818] sm:$0xff]
        %v820 = vld [vmem:[%s818 + $0x8] sm:$0xff]
        %v821 = vld [vmem:[%s818 + $0x10] sm:$0xff]
        %v822 = vld [vmem:[%s818 + $0x18] sm:$0xff]
        %v823 = vld [vmem:[%s818 + $0x20] sm:$0xff]
        %v824 = vld [vmem:[%s818 + $0x28] sm:$0xff]
        %v825 = vld [vmem:[%s818 + $0x30] sm:$0xff]
        %v826 = vld [vmem:[%s818 + $0x38] sm:$0xff]
        %v827 = vlaneseq
        %v828 = vshrl.u32 %v827, 7
        %v829 = vsub.s32 1, %v828
        %v830 = vrot.slane %v789, %v829
        %v831 = vmul.f32 %v830, %v819
        %v832 = vmul.f32 %v830, %v820
        %v833 = vmul.f32 %v830, %v821
        %v834 = vmul.f32 %v830, %v822
        %v835 = vmul.f32 %v830, %v823
        %v836 = vmul.f32 %v830, %v824
        %v837 = vmul.f32 %v830, %v825
        %v838 = vmul.f32 %v830, %v826
        %v839 = vadd.f32 %v810, %v831
        %v840 = vadd.f32 %v811, %v832
        %v841 = vadd.f32 %v812, %v833
        %v842 = vadd.f32 %v813, %v834
        %v843 = vadd.f32 %v814, %v835
        %v844 = vadd.f32 %v815, %v836
        %v845 = vadd.f32 %v816, %v837
        %v846 = vadd.f32 %v817, %v838
        %s847 = scalar_lea.vmem %s359, 128 [#allocation7]
        %v848 = vld [vmem:[%s847] sm:$0xff]
        %v849 = vld [vmem:[%s847 + $0x8] sm:$0xff]
        %v850 = vld [vmem:[%s847 + $0x10] sm:$0xff]
        %v851 = vld [vmem:[%s847 + $0x18] sm:$0xff]
        %v852 = vld [vmem:[%s847 + $0x20] sm:$0xff]
        %v853 = vld [vmem:[%s847 + $0x28] sm:$0xff]
        %v854 = vld [vmem:[%s847 + $0x30] sm:$0xff]
        %v855 = vld [vmem:[%s847 + $0x38] sm:$0xff]
        %v856 = vlaneseq
        %v857 = vshrl.u32 %v856, 7
        %v858 = vsub.s32 2, %v857
        %v859 = vrot.slane %v789, %v858
        %v860 = vmul.f32 %v859, %v848
        %v861 = vmul.f32 %v859, %v849
        %v862 = vmul.f32 %v859, %v850
        %v863 = vmul.f32 %v859, %v851
        %v864 = vmul.f32 %v859, %v852
        %v865 = vmul.f32 %v859, %v853
        %v866 = vmul.f32 %v859, %v854
        %v867 = vmul.f32 %v859, %v855
        %v868 = vadd.f32 %v839, %v860
        %v869 = vadd.f32 %v840, %v861
        %v870 = vadd.f32 %v841, %v862
        %v871 = vadd.f32 %v842, %v863
        %v872 = vadd.f32 %v843, %v864
        %v873 = vadd.f32 %v844, %v865
        %v874 = vadd.f32 %v845, %v866
        %v875 = vadd.f32 %v846, %v867
        %s876 = scalar_lea.vmem %s359, 192 [#allocation7]
        %v877 = vld [vmem:[%s876] sm:$0xff]
        %v878 = vld [vmem:[%s876 + $0x8] sm:$0xff]
        %v879 = vld [vmem:[%s876 + $0x10] sm:$0xff]
        %v880 = vld [vmem:[%s876 + $0x18] sm:$0xff]
        %v881 = vld [vmem:[%s876 + $0x20] sm:$0xff]
        %v882 = vld [vmem:[%s876 + $0x28] sm:$0xff]
        %v883 = vld [vmem:[%s876 + $0x30] sm:$0xff]
        %v884 = vld [vmem:[%s876 + $0x38] sm:$0xff]
        %v885 = vlaneseq
        %v886 = vshrl.u32 %v885, 7
        %v887 = vsub.s32 3, %v886
        %v888 = vrot.slane %v789, %v887
        %v889 = vmul.f32 %v888, %v877
        %v890 = vmul.f32 %v888, %v878
        %v891 = vmul.f32 %v888, %v879
        %v892 = vmul.f32 %v888, %v880
        %v893 = vmul.f32 %v888, %v881
        %v894 = vmul.f32 %v888, %v882
        %v895 = vmul.f32 %v888, %v883
        %v896 = vmul.f32 %v888, %v884
        %v897 = vadd.f32 %v868, %v889
        %v898 = vadd.f32 %v869, %v890
        %v899 = vadd.f32 %v870, %v891
        %v900 = vadd.f32 %v871, %v892
        %v901 = vadd.f32 %v872, %v893
        %v902 = vadd.f32 %v873, %v894
        %v903 = vadd.f32 %v874, %v895
        %v904 = vadd.f32 %v875, %v896
        %s905 = scalar_lea.vmem %s359, 256 [#allocation7]
        %v906 = vld [vmem:[%s905] sm:$0xff]
        %v907 = vld [vmem:[%s905 + $0x8] sm:$0xff]
        %v908 = vld [vmem:[%s905 + $0x10] sm:$0xff]
        %v909 = vld [vmem:[%s905 + $0x18] sm:$0xff]
        %v910 = vld [vmem:[%s905 + $0x20] sm:$0xff]
        %v911 = vld [vmem:[%s905 + $0x28] sm:$0xff]
        %v912 = vld [vmem:[%s905 + $0x30] sm:$0xff]
        %v913 = vld [vmem:[%s905 + $0x38] sm:$0xff]
        %v914 = vlaneseq
        %v915 = vshrl.u32 %v914, 7
        %v916 = vsub.s32 4, %v915
        %v917 = vrot.slane %v789, %v916
        %v918 = vmul.f32 %v917, %v906
        %v919 = vmul.f32 %v917, %v907
        %v920 = vmul.f32 %v917, %v908
        %v921 = vmul.f32 %v917, %v909
        %v922 = vmul.f32 %v917, %v910
        %v923 = vmul.f32 %v917, %v911
        %v924 = vmul.f32 %v917, %v912
        %v925 = vmul.f32 %v917, %v913
        %v926 = vadd.f32 %v897, %v918
        %v927 = vadd.f32 %v898, %v919
        %v928 = vadd.f32 %v899, %v920
        %v929 = vadd.f32 %v900, %v921
        %v930 = vadd.f32 %v901, %v922
        %v931 = vadd.f32 %v902, %v923
        %v932 = vadd.f32 %v903, %v924
        %v933 = vadd.f32 %v904, %v925
        %s934 = scalar_lea.vmem %s359, 320 [#allocation7]
        %v935 = vld [vmem:[%s934] sm:$0xff]
        %v936 = vld [vmem:[%s934 + $0x8] sm:$0xff]
        %v937 = vld [vmem:[%s934 + $0x10] sm:$0xff]
        %v938 = vld [vmem:[%s934 + $0x18] sm:$0xff]
        %v939 = vld [vmem:[%s934 + $0x20] sm:$0xff]
        %v940 = vld [vmem:[%s934 + $0x28] sm:$0xff]
        %v941 = vld [vmem:[%s934 + $0x30] sm:$0xff]
        %v942 = vld [vmem:[%s934 + $0x38] sm:$0xff]
        %v943 = vlaneseq
        %v944 = vshrl.u32 %v943, 7
        %v945 = vsub.s32 5, %v944
        %v946 = vrot.slane %v789, %v945
        %v947 = vmul.f32 %v946, %v935
        %v948 = vmul.f32 %v946, %v936
        %v949 = vmul.f32 %v946, %v937
        %v950 = vmul.f32 %v946, %v938
        %v951 = vmul.f32 %v946, %v939
        %v952 = vmul.f32 %v946, %v940
        %v953 = vmul.f32 %v946, %v941
        %v954 = vmul.f32 %v946, %v942
        %v955 = vadd.f32 %v926, %v947
        %v956 = vadd.f32 %v927, %v948
        %v957 = vadd.f32 %v928, %v949
        %v958 = vadd.f32 %v929, %v950
        %v959 = vadd.f32 %v930, %v951
        %v960 = vadd.f32 %v931, %v952
        %v961 = vadd.f32 %v932, %v953
        %v962 = vadd.f32 %v933, %v954
        %s963 = scalar_lea.vmem %s359, 384 [#allocation7]
        %v964 = vld [vmem:[%s963] sm:$0xff]
        %v965 = vld [vmem:[%s963 + $0x8] sm:$0xff]
        %v966 = vld [vmem:[%s963 + $0x10] sm:$0xff]
        %v967 = vld [vmem:[%s963 + $0x18] sm:$0xff]
        %v968 = vld [vmem:[%s963 + $0x20] sm:$0xff]
        %v969 = vld [vmem:[%s963 + $0x28] sm:$0xff]
        %v970 = vld [vmem:[%s963 + $0x30] sm:$0xff]
        %v971 = vld [vmem:[%s963 + $0x38] sm:$0xff]
        %v972 = vlaneseq
        %v973 = vshrl.u32 %v972, 7
        %v974 = vsub.s32 6, %v973
        %v975 = vrot.slane %v789, %v974
        %v976 = vmul.f32 %v975, %v964
        %v977 = vmul.f32 %v975, %v965
        %v978 = vmul.f32 %v975, %v966
        %v979 = vmul.f32 %v975, %v967
        %v980 = vmul.f32 %v975, %v968
        %v981 = vmul.f32 %v975, %v969
        %v982 = vmul.f32 %v975, %v970
        %v983 = vmul.f32 %v975, %v971
        %v984 = vadd.f32 %v955, %v976
        %v985 = vadd.f32 %v956, %v977
        %v986 = vadd.f32 %v957, %v978
        %v987 = vadd.f32 %v958, %v979
        %v988 = vadd.f32 %v959, %v980
        %v989 = vadd.f32 %v960, %v981
        %v990 = vadd.f32 %v961, %v982
        %v991 = vadd.f32 %v962, %v983
        %s992 = scalar_lea.vmem %s359, 448 [#allocation7]
        %v993 = vld [vmem:[%s992] sm:$0xff]
        %v994 = vld [vmem:[%s992 + $0x8] sm:$0xff]
        %v995 = vld [vmem:[%s992 + $0x10] sm:$0xff]
        %v996 = vld [vmem:[%s992 + $0x18] sm:$0xff]
        %v997 = vld [vmem:[%s992 + $0x20] sm:$0xff]
        %v998 = vld [vmem:[%s992 + $0x28] sm:$0xff]
        %v999 = vld [vmem:[%s992 + $0x30] sm:$0xff]
        %v1000 = vld [vmem:[%s992 + $0x38] sm:$0xff]
        %v1001 = vlaneseq
        %v1002 = vshrl.u32 %v1001, 7
        %v1003 = vsub.s32 7, %v1002
        %v1004 = vrot.slane %v789, %v1003
        %v1005 = vmul.f32 %v1004, %v993
        %v1006 = vmul.f32 %v1004, %v994
        %v1007 = vmul.f32 %v1004, %v995
        %v1008 = vmul.f32 %v1004, %v996
        %v1009 = vmul.f32 %v1004, %v997
        %v1010 = vmul.f32 %v1004, %v998
        %v1011 = vmul.f32 %v1004, %v999
        %v1012 = vmul.f32 %v1004, %v1000
        %v1013 = vadd.f32 %v984, %v1005
        %v1014 = vadd.f32 %v985, %v1006
        %v1015 = vadd.f32 %v986, %v1007
        %v1016 = vadd.f32 %v987, %v1008
        %v1017 = vadd.f32 %v988, %v1009
        %v1018 = vadd.f32 %v989, %v1010
        %v1019 = vadd.f32 %v990, %v1011
        %v1020 = vadd.f32 %v991, %v1012
        %1021 = vst [vmem:[%s418] sm:$0xff] %v789
        %1022 = vst [vmem:[%s411] sm:$0xff] %v1013
        %1023 = vst [vmem:[%s411 + $0x8] sm:$0xff] %v1014
        %1024 = vst [vmem:[%s411 + $0x10] sm:$0xff] %v1015
        %1025 = vst [vmem:[%s411 + $0x18] sm:$0xff] %v1016
        %1026 = vst [vmem:[%s411 + $0x20] sm:$0xff] %v1017
        %1027 = vst [vmem:[%s411 + $0x28] sm:$0xff] %v1018
        %1028 = vst [vmem:[%s411 + $0x30] sm:$0xff] %v1019
        %1029 = vst [vmem:[%s411 + $0x38] sm:$0xff] %v1020
        %s1030 = sand.u32 %s188, 1
        %s1031 = scalar_lea.sflag [#allocation4], %s1030
        %s1032 = sand.u32 %s188, 1
        %s1033 = smul.addr %s1032, 64
        %s1034 = scalar_lea.vmem [#allocation10], %s1033
        %s1035 = sand.u32 %s214, 1
        %s1036 = scalar_lea.sflag [#allocation12], %s1035
        %s1037 = sand.u32 %s214, 1
        %s1038 = smul.addr %s1037, 8
        %s1039 = scalar_lea.vmem [#allocation11], %s1038
        // Predicated region
        $region61: #{tpu_custom_call.1} parent=43 // pred_check
          %p1040 = pneg %p198
        $region62: #{tpu_custom_call.1} parent=43 // pred_check_branch
          %1042 = sbr.rel (%p1040) target = $region64
        $region63: #{tpu_custom_call.1} parent=43 // pred_region
          %s1044 = ssub.s32 1024, 1024
          %1045 = vsyncadd %s1031, %s1044
          %s1046 = smul.addr %s34, 128
          %s1047 = scalar_lea.hbm %s6, %s1046
          %s1048 = sshll.u32 %s1034, 4
          %s1049 = int_to_ptr.vmem [resolvable:$true] %s1048
          %1054 = dma.vmem_to_hbm [thread:$0]  %s1049, 1024, %s1047, %s1031, 128, 256, 8
        $region64: #{tpu_custom_call.1} parent=43 // pred_fallthru
          _
        // Predicated region
        $region65: #{tpu_custom_call.1} parent=43 // pred_check
          %p1055 = pneg %p224
        $region66: #{tpu_custom_call.1} parent=43 // pred_check_branch
          %1057 = sbr.rel (%p1055) target = $region68
        $region67: #{tpu_custom_call.1} parent=43 // pred_region
          %s1059 = ssub.s32 128, 128
          %1060 = vsyncadd %s1036, %s1059
          %s1061 = smul.addr %s34, 128
          %s1062 = scalar_lea.hbm %s7, %s1061
          %s1064 = sshll.u32 %s1039, 4
          %s1065 = int_to_ptr.vmem [resolvable:$true] %s1064
          %1067 = dma.vmem_to_hbm [thread:$0]  %s1065, 128, %s1062, %s1036
        $region68: #{tpu_custom_call.1} parent=43 // pred_fallthru
          _
      $region44: #{tpu_custom_call.1} parent=5 // pred_fallthru
        _
      %p1068 = scmp.le.s32.totalorder 2, %s29
      // Predicated region
      $region69: #{tpu_custom_call.1} parent=5 // pred_check
        %p1069 = pneg %p1068
      $region70: #{tpu_custom_call.1} parent=5 // pred_check_branch
        %1071 = sbr.rel (%p1069) target = $region72
      $region71: #{tpu_custom_call.1} parent=5 // pred_region
        %s1072 = ssub.s32 %s29, 2
        // Predicated region
        $region73: #{tpu_custom_call.1} parent=71 // pred_check
          %p1073 = pneg %p204
        $region74: #{tpu_custom_call.1} parent=71 // pred_check_branch
          %1075 = sbr.rel (%p1073) target = $region76
        $region75: #{tpu_custom_call.1} parent=71 // pred_region
          %s1076 = sand.u32 %s189, 1
          %s1077 = scalar_lea.sflag [#allocation4], %s1076
          %s1078 = sand.u32 %s189, 1
          %s1079 = smul.addr %s1078, 64
          %s1080 = scalar_lea.vmem [#allocation10], %s1079
          %1081 = dma.done %s1077, 1024
        $region76: #{tpu_custom_call.1} parent=71 // pred_fallthru
          _
        // Predicated region
        $region77: #{tpu_custom_call.1} parent=71 // pred_check
          %p1082 = pneg %p230
        $region78: #{tpu_custom_call.1} parent=71 // pred_check_branch
          %1084 = sbr.rel (%p1082) target = $region80
        $region79: #{tpu_custom_call.1} parent=71 // pred_region
          %s1085 = sand.u32 %s215, 1
          %s1086 = scalar_lea.sflag [#allocation12], %s1085
          %s1087 = sand.u32 %s215, 1
          %s1088 = smul.addr %s1087, 8
          %s1089 = scalar_lea.vmem [#allocation11], %s1088
          %1090 = dma.done %s1086, 128
        $region80: #{tpu_custom_call.1} parent=71 // pred_fallthru
          _
      $region72: #{tpu_custom_call.1} parent=5 // pred_fallthru
        _
    $region6: #{tpu_custom_call.1} parent=1 // loop_footer
      %s33 = sadd.s32 1, %s29
    $region7: #{tpu_custom_call.1} parent=1 // loop_footer_branch
      %28 = sbr.rel target = $region3
    $region8: #{tpu_custom_call.1} parent=1 // loop_exit
      _
    %1091 = vsyncpa [#allocation3], 1
    %s1092 = scalar_lea.sflag [#allocation3], 1
    %1093 = vsyncpa %s1092, 1
    %1094 = vsyncpa [#allocation6], 1
    %s1095 = scalar_lea.sflag [#allocation6], 1
    %1096 = vsyncpa %s1095, 1
    %1097 = vsyncpa [#allocation9], 1
    %s1098 = scalar_lea.sflag [#allocation9], 1
    %1099 = vsyncpa %s1098, 1
    %1100 = vsyncpa [#allocation4], 1
    %s1101 = scalar_lea.sflag [#allocation4], 1
    %1102 = vsyncpa %s1101, 1
    %1103 = vsyncpa [#allocation12], 1
    %s1104 = scalar_lea.sflag [#allocation12], 1
    %1105 = vsyncpa %s1104, 1

</llo_original>
